<compile_context>
chip_gen: v7x
topology: tpu7x:2x2x1
jax: 0.10.0
libtpu: 0.0.40
codegen_flags: <defaults>
</compile_context>

<pallas_src>
import jax
import jax.numpy as jnp
from jax.experimental import pallas as pl
from jax.experimental.pallas import tpu as pltpu

EPS = 1e-6          # VN EPS
BN_EPS = 1e-5       # nn.BatchNorm1d default eps
NEG_SLOPE = 0.2


def _fast_recip(x):
    """1/x via the EUP approximate reciprocal + one Newton-Raphson step (~f32)."""
    r = pl.reciprocal(x, approx=True)
    return r * (2.0 - x * r)


def _vn_linear_bn_leaky_relu(h, w_fused):
    """One VNLinearLeakyReLU block (dim=4, share_nonlinearity=False, train-mode BN).

    h       : [B, Ci, 3*N]  channels on sublanes, lanes ordered (vector j, sample n)
    w_fused : [2*Co, Ci]    rows [0,Co) = map_to_feat.weight, rows [Co,2Co) = map_to_dir.weight
    returns : [B, Co, 3*N]
    """
    B, Ci, M = h.shape
    N = M // 3
    Co = w_fused.shape[0] // 2

    # Fused feat|dir channel contraction: one W[2Co,Ci] @ X[Ci,3N] MXU call per
    # batch element, wide 3N axis on lanes.
    pd = jnp.stack(
        [jnp.dot(w_fused, h[b], preferred_element_type=jnp.float32) for b in range(B)],
        axis=0)                                              # [B, 2Co, 3N]
    p, d = pd[:, :Co, :], pd[:, Co:, :]

    # Per-vector-component views: contiguous lane ranges.
    p0, p1, p2 = p[:, :, 0:N], p[:, :, N:2 * N], p[:, :, 2 * N:3 * N]   # [B, Co, N]
    d0, d1, d2 = d[:, :, 0:N], d[:, :, N:2 * N], d[:, :, 2 * N:3 * N]

    # ---- VNBatchNorm: BatchNorm1d in training mode (biased batch statistics) ----
    norm = jnp.sqrt(p0 * p0 + p1 * p1 + p2 * p2) + EPS       # [B, Co, N]
    mean = jnp.mean(norm, axis=(0, 2), keepdims=True)        # [1, Co, 1]
    var = jnp.mean((norm - mean) ** 2, axis=(0, 2), keepdims=True)
    #   scale = (norm - mean) / sqrt(var + eps) / norm   (EUP rsqrt + reciprocal)
    scale = (norm - mean) * jax.lax.rsqrt(var + BN_EPS) * _fast_recip(norm)
    p0, p1, p2 = p0 * scale, p1 * scale, p2 * scale

    # ---- VN leaky ReLU ----
    dot = p0 * d0 + p1 * d1 + p2 * d2                        # [B, Co, N]
    dsq = d0 * d0 + d1 * d1 + d2 * d2
    # slope*p + (1-slope)*(mask*p + (1-mask)*(p - dot/(dsq+eps)*d))
    #   ==  p - where(dot < 0, (1-slope)*dot/(dsq+eps), 0) * d
    coef = jnp.where(dot >= 0.0, 0.0,
                     (1.0 - NEG_SLOPE) * dot * _fast_recip(dsq + EPS))
    o0, o1, o2 = p0 - coef * d0, p1 - coef * d1, p2 - coef * d2
    return jnp.concatenate([o0, o1, o2], axis=2)             # [B, Co, 3N]


# TODO(synk): the VN batch-norm needs global (B, N) statistics, so this kernel
# runs as a single whole-array invocation (grid=()).  For realistic point-cloud
# sizes on v7x (64 MiB VMEM, 2 TensorCores) it should be restructured into a
# two-pass tiled form (pass 1 accumulates per-channel sum/sumsq of |p| over
# (B, N) tiles, pass 2 applies BN + leaky-relu + the frame contraction) with a
# "parallel" grid axis; not needed at the synthetic shapes used here.
def vn_std_feature_kernel(x_ref, w1_ref, w2_ref, wlin_ref, xstd_ref, z_ref):
    x = x_ref[...]                                           # [B, C, 3N]  f32
    B, C, M = x.shape
    N = M // 3

    h1 = _vn_linear_bn_leaky_relu(x, w1_ref[...])            # [B, C//2, 3N]
    h2 = _vn_linear_bn_leaky_relu(h1, w2_ref[...])           # [B, C//4, 3N]

    # vn_lin:  z[b, k, j*N+n] = sum_c wlin[k, c] * h2[b, c, j*N+n]
    wlin = wlin_ref[...]                                     # [3, C//4]
    z = jnp.stack(
        [jnp.dot(wlin, h2[b], preferred_element_type=jnp.float32) for b in range(B)],
        axis=0)                                              # [B, 3(k), 3N(j,n)]

    # z0[b, j, k, n] = z[b, k, j*N+n]  -> emitted lane-dense as [B, 3(j), 3(k)*N]
    rows = []
    for j in range(3):
        rows.append(jnp.concatenate(
            [z[:, k:k + 1, j * N:(j + 1) * N] for k in range(3)], axis=2))  # [B,1,3N]
    z_ref[...] = jnp.concatenate(rows, axis=1)               # [B, 3, 3N]

    # x_std[b, i, k, n] = sum_j x[b, i, j*N+n] * z[b, k, j*N+n]
    #   -> emitted lane-dense as [B, C, 3(k)*N]
    xj = [x[:, :, j * N:(j + 1) * N] for j in range(3)]      # 3 x [B, C, N]
    cols = []
    for k in range(3):
        acc = xj[0] * z[:, k:k + 1, 0:N]                     # init with j=0 term
        acc = acc + xj[1] * z[:, k:k + 1, N:2 * N]
        acc = acc + xj[2] * z[:, k:k + 1, 2 * N:3 * N]
        cols.append(acc)                                     # [B, C, N]
    xstd_ref[...] = jnp.concatenate(cols, axis=2)            # [B, C, 3N]


def vn_std_feature(x, w1f, w1d, w2f, w2d, wlin):
    """VNStdFeature(dim=4, normalize_frame=False) forward.

    x  : [B, C, 3, N]  (PyTorch layout)
    w* : nn.Linear weights, shape [out_features, in_features]
    Returns (x_std [B, C, 3, N], z0 [B, 3, 3, N]) exactly as the PyTorch module.
    """
    B, C, J, N = x.shape
    assert J == 3

    # Free reshapes / tiny weight concatenations only -- no transposes.
    x_flat = x.reshape(B, C, J * N).astype(jnp.float32)
    w1 = jnp.concatenate([w1f, w1d], axis=0).astype(jnp.float32)    # [C,    C]
    w2 = jnp.concatenate([w2f, w2d], axis=0).astype(jnp.float32)    # [C//2, C//2]
    wl = wlin.astype(jnp.float32)                                   # [3,    C//4]
    # TODO(synk): for large shapes cast matmul operands to bf16 (keep f32
    # accumulation) to halve VMEM/HBM traffic on v6e/v7x.

    vmem = pl.BlockSpec(memory_space=pltpu.MemorySpace.VMEM)
    xstd_flat, z_flat = pl.pallas_call(
        vn_std_feature_kernel,
        out_shape=(jax.ShapeDtypeStruct((B, C, J * N), jnp.float32),
                   jax.ShapeDtypeStruct((B, 3, J * N), jnp.float32)),
        in_specs=[vmem, vmem, vmem, vmem],
        out_specs=(vmem, vmem),
        compiler_params=pltpu.CompilerParams(vmem_limit_bytes=48 * 1024 * 1024),
    )(x_flat, w1, w2, wl)

    return xstd_flat.reshape(B, C, 3, N), z_flat.reshape(B, 3, 3, N)


# ---------------------------------------------------------------------------
# Pure-JAX reference (PyTorch layout) for the correctness check
# ---------------------------------------------------------------------------
def _reference(x, w1f, w1d, w2f, w2d, wlin):
    def vn_block(xc, wf, wd):                          # xc: [B,C,3,N]
        p = jnp.einsum('oc,bcjn->bojn', wf, xc)
        norm = jnp.sqrt(jnp.sum(p * p, axis=2)) + EPS  # [B,O,N]
        mean = jnp.mean(norm, axis=(0, 2), keepdims=True)
        var = jnp.mean((norm - mean) ** 2, axis=(0, 2), keepdims=True)
        nbn = (norm - mean) / jnp.sqrt(var + BN_EPS)
        p = p / norm[:, :, None, :] * nbn[:, :, None, :]
        d = jnp.einsum('oc,bcjn->bojn', wd, xc)
        dot = jnp.sum(p * d, axis=2, keepdims=True)
        mask = (dot >= 0).astype(p.dtype)
        dsq = jnp.sum(d * d, axis=2, keepdims=True)
        return NEG_SLOPE * p + (1 - NEG_SLOPE) * (
            mask * p + (1 - mask) * (p - dot / (dsq + EPS) * d))

    h = vn_block(x, w1f, w1d)
    h = vn_block(h, w2f, w2d)
    z = jnp.einsum('kc,bcjn->bkjn', wlin, h)           # [B,3(k),3(j),N]
    z0 = jnp.transpose(z, (0, 2, 1, 3))                # [B,j,k,N]
    x_std = jnp.einsum('bijm,bjkm->bikm', x, z0)
    return x_std, z0


if __name__ == "__main__":
    B, C, N = 2, 16, 16            # in_channels=16, dim=4 input: [B, C, 3, N]
    key = jax.random.PRNGKey(0)
    kx, k1, k2, k3, k4, k5 = jax.random.split(key, 6)

    x = jax.random.normal(kx, (B, C, 3, N), jnp.float32)

    def lin_weight(k, out_c, in_c):
        bound = 1.0 / jnp.sqrt(jnp.float32(in_c))
        return jax.random.uniform(k, (out_c, in_c), jnp.float32, -bound, bound)

    w1f = lin_weight(k1, C // 2, C)        # vn1.map_to_feat
    w1d = lin_weight(k2, C // 2, C)        # vn1.map_to_dir
    w2f = lin_weight(k3, C // 4, C // 2)   # vn2.map_to_feat
    w2d = lin_weight(k4, C // 4, C // 2)   # vn2.map_to_dir
    wlin = lin_weight(k5, 3, C // 4)       # vn_lin (normalize_frame=False)

    x_std, z0 = jax.jit(vn_std_feature)(x, w1f, w1d, w2f, w2d, wlin)
    jax.block_until_ready((x_std, z0))

    xs_ref, z_ref = _reference(x, w1f, w1d, w2f, w2d, wlin)
    assert x_std.shape == (B, C, 3, N) and z0.shape == (B, 3, 3, N)
    assert jnp.allclose(x_std, xs_ref, atol=2e-3, rtol=2e-3)
    assert jnp.allclose(z0, z_ref, atol=2e-3, rtol=2e-3)

    # TODO(synk): normalize_frame=True branch (Gram-Schmidt + cross product) not
    # implemented; module default is normalize_frame=False.
    print("KERNEL_OK")
</pallas_src>

<mosaic_0001>
module attributes {stable_mosaic.version = 11 : i64} {
  func.func @vn_std_feature_kernel(%arg0: memref<2x16x48xf32, #tpu.memory_space<vmem>>, %arg1: memref<16x16xf32, #tpu.memory_space<vmem>>, %arg2: memref<8x8xf32, #tpu.memory_space<vmem>>, %arg3: memref<3x4xf32, #tpu.memory_space<vmem>>, %arg4: memref<2x16x48xf32, #tpu.memory_space<vmem>>, %arg5: memref<2x3x48xf32, #tpu.memory_space<vmem>>) attributes {dimension_semantics = [], scalar_prefetch = 0 : i64, scratch_operands = 0 : i64, tpu.core_type = #tpu.core_type<tc>} {
    %c0 = arith.constant 0 : index
    %c0_0 = arith.constant 0 : index
    %c0_1 = arith.constant 0 : index
    %0 = vector.load %arg0[%c0, %c0_0, %c0_1] : memref<2x16x48xf32, #tpu.memory_space<vmem>>, vector<2x16x48xf32>
    %c0_2 = arith.constant 0 : index
    %c0_3 = arith.constant 0 : index
    %1 = vector.load %arg1[%c0_2, %c0_3] : memref<16x16xf32, #tpu.memory_space<vmem>>, vector<16x16xf32>
    %2 = vector.extract_strided_slice %0 {offsets = [0, 0, 0], sizes = [1, 16, 48], strides = [1, 1, 1]} : vector<2x16x48xf32> to vector<1x16x48xf32>
    %3 = vector.shape_cast %2 : vector<1x16x48xf32> to vector<16x48xf32>
    %cst = arith.constant dense<0.000000e+00> : vector<16x48xf32>
    %4 = tpu.matmul %1, %3, %cst {dimension_numbers = #tpu.dot_dimension_numbers<[1], [0], [0], [1], [0, 0, 1, 1], [], []>} : vector<16x16xf32>, vector<16x48xf32>, vector<16x48xf32> -> vector<16x48xf32>
    %5 = vector.extract_strided_slice %0 {offsets = [1, 0, 0], sizes = [1, 16, 48], strides = [1, 1, 1]} : vector<2x16x48xf32> to vector<1x16x48xf32>
    %6 = vector.shape_cast %5 : vector<1x16x48xf32> to vector<16x48xf32>
    %cst_4 = arith.constant dense<0.000000e+00> : vector<16x48xf32>
    %7 = tpu.matmul %1, %6, %cst_4 {dimension_numbers = #tpu.dot_dimension_numbers<[1], [0], [0], [1], [0, 0, 1, 1], [], []>} : vector<16x16xf32>, vector<16x48xf32>, vector<16x48xf32> -> vector<16x48xf32>
    %8 = vector.shape_cast %4 : vector<16x48xf32> to vector<1x16x48xf32>
    %9 = vector.shape_cast %7 : vector<16x48xf32> to vector<1x16x48xf32>
    %10 = tpu.concatenate %8, %9 in 0 : vector<1x16x48xf32>, vector<1x16x48xf32> -> vector<2x16x48xf32>
    %11 = vector.extract_strided_slice %10 {offsets = [0, 0, 0], sizes = [2, 8, 48], strides = [1, 1, 1]} : vector<2x16x48xf32> to vector<2x8x48xf32>
    %12 = vector.extract_strided_slice %10 {offsets = [0, 8, 0], sizes = [2, 8, 48], strides = [1, 1, 1]} : vector<2x16x48xf32> to vector<2x8x48xf32>
    %13 = vector.extract_strided_slice %11 {offsets = [0, 0, 0], sizes = [2, 8, 16], strides = [1, 1, 1]} : vector<2x8x48xf32> to vector<2x8x16xf32>
    %14 = vector.extract_strided_slice %11 {offsets = [0, 0, 16], sizes = [2, 8, 16], strides = [1, 1, 1]} : vector<2x8x48xf32> to vector<2x8x16xf32>
    %15 = vector.extract_strided_slice %11 {offsets = [0, 0, 32], sizes = [2, 8, 16], strides = [1, 1, 1]} : vector<2x8x48xf32> to vector<2x8x16xf32>
    %16 = vector.extract_strided_slice %12 {offsets = [0, 0, 0], sizes = [2, 8, 16], strides = [1, 1, 1]} : vector<2x8x48xf32> to vector<2x8x16xf32>
    %17 = vector.extract_strided_slice %12 {offsets = [0, 0, 16], sizes = [2, 8, 16], strides = [1, 1, 1]} : vector<2x8x48xf32> to vector<2x8x16xf32>
    %18 = vector.extract_strided_slice %12 {offsets = [0, 0, 32], sizes = [2, 8, 16], strides = [1, 1, 1]} : vector<2x8x48xf32> to vector<2x8x16xf32>
    %19 = arith.mulf %13, %13 : vector<2x8x16xf32>
    %20 = arith.mulf %14, %14 : vector<2x8x16xf32>
    %21 = arith.addf %19, %20 : vector<2x8x16xf32>
    %22 = arith.mulf %15, %15 : vector<2x8x16xf32>
    %23 = arith.addf %21, %22 : vector<2x8x16xf32>
    %24 = math.sqrt %23 : vector<2x8x16xf32>
    %cst_5 = arith.constant 9.99999997E-7 : f32
    %25 = vector.broadcast %cst_5 : f32 to vector<2x8x16xf32>
    %26 = arith.addf %24, %25 : vector<2x8x16xf32>
    %cst_6 = arith.constant dense<0.000000e+00> : vector<8xf32>
    %27 = vector.multi_reduction <add>, %26, %cst_6 [0, 2] : vector<2x8x16xf32> to vector<8xf32>
    %28 = vector.shape_cast %27 : vector<8xf32> to vector<1x8x1xf32>
    %cst_7 = arith.constant 3.200000e+01 : f32
    %29 = vector.broadcast %cst_7 : f32 to vector<1x8x1xf32>
    %30 = arith.divf %28, %29 : vector<1x8x1xf32>
    %31 = vector.broadcast %30 : vector<1x8x1xf32> to vector<2x8x16xf32>
    %32 = arith.subf %26, %31 : vector<2x8x16xf32>
    %33 = arith.mulf %32, %32 : vector<2x8x16xf32>
    %cst_8 = arith.constant dense<0.000000e+00> : vector<8xf32>
    %34 = vector.multi_reduction <add>, %33, %cst_8 [0, 2] : vector<2x8x16xf32> to vector<8xf32>
    %35 = vector.shape_cast %34 : vector<8xf32> to vector<1x8x1xf32>
    %cst_9 = arith.constant 3.200000e+01 : f32
    %36 = vector.broadcast %cst_9 : f32 to vector<1x8x1xf32>
    %37 = arith.divf %35, %36 : vector<1x8x1xf32>
    %38 = vector.broadcast %30 : vector<1x8x1xf32> to vector<2x8x16xf32>
    %39 = arith.subf %26, %38 : vector<2x8x16xf32>
    %cst_10 = arith.constant 9.99999974E-6 : f32
    %40 = vector.broadcast %cst_10 : f32 to vector<1x8x1xf32>
    %41 = arith.addf %37, %40 : vector<1x8x1xf32>
    %42 = math.rsqrt %41 : vector<1x8x1xf32>
    %43 = vector.broadcast %42 : vector<1x8x1xf32> to vector<2x8x16xf32>
    %44 = arith.mulf %39, %43 : vector<2x8x16xf32>
    %45 = tpu.reciprocal %26 {approx = true} : vector<2x8x16xf32> -> vector<2x8x16xf32>
    %46 = arith.mulf %26, %45 : vector<2x8x16xf32>
    %cst_11 = arith.constant 2.000000e+00 : f32
    %47 = vector.broadcast %cst_11 : f32 to vector<2x8x16xf32>
    %48 = arith.subf %47, %46 : vector<2x8x16xf32>
    %49 = arith.mulf %45, %48 : vector<2x8x16xf32>
    %50 = arith.mulf %44, %49 : vector<2x8x16xf32>
    %51 = arith.mulf %13, %50 : vector<2x8x16xf32>
    %52 = arith.mulf %14, %50 : vector<2x8x16xf32>
    %53 = arith.mulf %15, %50 : vector<2x8x16xf32>
    %54 = arith.mulf %51, %16 : vector<2x8x16xf32>
    %55 = arith.mulf %52, %17 : vector<2x8x16xf32>
    %56 = arith.addf %54, %55 : vector<2x8x16xf32>
    %57 = arith.mulf %53, %18 : vector<2x8x16xf32>
    %58 = arith.addf %56, %57 : vector<2x8x16xf32>
    %59 = arith.mulf %16, %16 : vector<2x8x16xf32>
    %60 = arith.mulf %17, %17 : vector<2x8x16xf32>
    %61 = arith.addf %59, %60 : vector<2x8x16xf32>
    %62 = arith.mulf %18, %18 : vector<2x8x16xf32>
    %63 = arith.addf %61, %62 : vector<2x8x16xf32>
    %cst_12 = arith.constant 0.000000e+00 : f32
    %64 = vector.broadcast %cst_12 : f32 to vector<2x8x16xf32>
    %65 = arith.cmpf oge, %58, %64 : vector<2x8x16xf32>
    %cst_13 = arith.constant 8.000000e-01 : f32
    %66 = vector.broadcast %cst_13 : f32 to vector<2x8x16xf32>
    %67 = arith.mulf %66, %58 : vector<2x8x16xf32>
    %cst_14 = arith.constant 9.99999997E-7 : f32
    %68 = vector.broadcast %cst_14 : f32 to vector<2x8x16xf32>
    %69 = arith.addf %63, %68 : vector<2x8x16xf32>
    %70 = tpu.reciprocal %69 {approx = true} : vector<2x8x16xf32> -> vector<2x8x16xf32>
    %71 = arith.mulf %69, %70 : vector<2x8x16xf32>
    %cst_15 = arith.constant 2.000000e+00 : f32
    %72 = vector.broadcast %cst_15 : f32 to vector<2x8x16xf32>
    %73 = arith.subf %72, %71 : vector<2x8x16xf32>
    %74 = arith.mulf %70, %73 : vector<2x8x16xf32>
    %75 = arith.mulf %67, %74 : vector<2x8x16xf32>
    %cst_16 = arith.constant 0.000000e+00 : f32
    %76 = vector.broadcast %cst_16 : f32 to vector<2x8x16xf32>
    %77 = arith.select %65, %76, %75 : vector<2x8x16xi1>, vector<2x8x16xf32>
    %78 = arith.mulf %77, %16 : vector<2x8x16xf32>
    %79 = arith.subf %51, %78 : vector<2x8x16xf32>
    %80 = arith.mulf %77, %17 : vector<2x8x16xf32>
    %81 = arith.subf %52, %80 : vector<2x8x16xf32>
    %82 = arith.mulf %77, %18 : vector<2x8x16xf32>
    %83 = arith.subf %53, %82 : vector<2x8x16xf32>
    %84 = tpu.concatenate %79, %81, %83 in 2 : vector<2x8x16xf32>, vector<2x8x16xf32>, vector<2x8x16xf32> -> vector<2x8x48xf32>
    %c0_17 = arith.constant 0 : index
    %c0_18 = arith.constant 0 : index
    %85 = vector.load %arg2[%c0_17, %c0_18] : memref<8x8xf32, #tpu.memory_space<vmem>>, vector<8x8xf32>
    %86 = vector.extract_strided_slice %84 {offsets = [0, 0, 0], sizes = [1, 8, 48], strides = [1, 1, 1]} : vector<2x8x48xf32> to vector<1x8x48xf32>
    %87 = vector.shape_cast %86 : vector<1x8x48xf32> to vector<8x48xf32>
    %cst_19 = arith.constant dense<0.000000e+00> : vector<8x48xf32>
    %88 = tpu.matmul %85, %87, %cst_19 {dimension_numbers = #tpu.dot_dimension_numbers<[1], [0], [0], [1], [0, 0, 1, 1], [], []>} : vector<8x8xf32>, vector<8x48xf32>, vector<8x48xf32> -> vector<8x48xf32>
    %89 = vector.extract_strided_slice %84 {offsets = [1, 0, 0], sizes = [1, 8, 48], strides = [1, 1, 1]} : vector<2x8x48xf32> to vector<1x8x48xf32>
    %90 = vector.shape_cast %89 : vector<1x8x48xf32> to vector<8x48xf32>
    %cst_20 = arith.constant dense<0.000000e+00> : vector<8x48xf32>
    %91 = tpu.matmul %85, %90, %cst_20 {dimension_numbers = #tpu.dot_dimension_numbers<[1], [0], [0], [1], [0, 0, 1, 1], [], []>} : vector<8x8xf32>, vector<8x48xf32>, vector<8x48xf32> -> vector<8x48xf32>
    %92 = vector.shape_cast %88 : vector<8x48xf32> to vector<1x8x48xf32>
    %93 = vector.shape_cast %91 : vector<8x48xf32> to vector<1x8x48xf32>
    %94 = tpu.concatenate %92, %93 in 0 : vector<1x8x48xf32>, vector<1x8x48xf32> -> vector<2x8x48xf32>
    %95 = vector.extract_strided_slice %94 {offsets = [0, 0, 0], sizes = [2, 4, 48], strides = [1, 1, 1]} : vector<2x8x48xf32> to vector<2x4x48xf32>
    %96 = vector.extract_strided_slice %94 {offsets = [0, 4, 0], sizes = [2, 4, 48], strides = [1, 1, 1]} : vector<2x8x48xf32> to vector<2x4x48xf32>
    %97 = vector.extract_strided_slice %95 {offsets = [0, 0, 0], sizes = [2, 4, 16], strides = [1, 1, 1]} : vector<2x4x48xf32> to vector<2x4x16xf32>
    %98 = vector.extract_strided_slice %95 {offsets = [0, 0, 16], sizes = [2, 4, 16], strides = [1, 1, 1]} : vector<2x4x48xf32> to vector<2x4x16xf32>
    %99 = vector.extract_strided_slice %95 {offsets = [0, 0, 32], sizes = [2, 4, 16], strides = [1, 1, 1]} : vector<2x4x48xf32> to vector<2x4x16xf32>
    %100 = vector.extract_strided_slice %96 {offsets = [0, 0, 0], sizes = [2, 4, 16], strides = [1, 1, 1]} : vector<2x4x48xf32> to vector<2x4x16xf32>
    %101 = vector.extract_strided_slice %96 {offsets = [0, 0, 16], sizes = [2, 4, 16], strides = [1, 1, 1]} : vector<2x4x48xf32> to vector<2x4x16xf32>
    %102 = vector.extract_strided_slice %96 {offsets = [0, 0, 32], sizes = [2, 4, 16], strides = [1, 1, 1]} : vector<2x4x48xf32> to vector<2x4x16xf32>
    %103 = arith.mulf %97, %97 : vector<2x4x16xf32>
    %104 = arith.mulf %98, %98 : vector<2x4x16xf32>
    %105 = arith.addf %103, %104 : vector<2x4x16xf32>
    %106 = arith.mulf %99, %99 : vector<2x4x16xf32>
    %107 = arith.addf %105, %106 : vector<2x4x16xf32>
    %108 = math.sqrt %107 : vector<2x4x16xf32>
    %cst_21 = arith.constant 9.99999997E-7 : f32
    %109 = vector.broadcast %cst_21 : f32 to vector<2x4x16xf32>
    %110 = arith.addf %108, %109 : vector<2x4x16xf32>
    %cst_22 = arith.constant dense<0.000000e+00> : vector<4xf32>
    %111 = vector.multi_reduction <add>, %110, %cst_22 [0, 2] : vector<2x4x16xf32> to vector<4xf32>
    %112 = vector.shape_cast %111 : vector<4xf32> to vector<1x4x1xf32>
    %cst_23 = arith.constant 3.200000e+01 : f32
    %113 = vector.broadcast %cst_23 : f32 to vector<1x4x1xf32>
    %114 = arith.divf %112, %113 : vector<1x4x1xf32>
    %115 = vector.broadcast %114 : vector<1x4x1xf32> to vector<2x4x16xf32>
    %116 = arith.subf %110, %115 : vector<2x4x16xf32>
    %117 = arith.mulf %116, %116 : vector<2x4x16xf32>
    %cst_24 = arith.constant dense<0.000000e+00> : vector<4xf32>
    %118 = vector.multi_reduction <add>, %117, %cst_24 [0, 2] : vector<2x4x16xf32> to vector<4xf32>
    %119 = vector.shape_cast %118 : vector<4xf32> to vector<1x4x1xf32>
    %cst_25 = arith.constant 3.200000e+01 : f32
    %120 = vector.broadcast %cst_25 : f32 to vector<1x4x1xf32>
    %121 = arith.divf %119, %120 : vector<1x4x1xf32>
    %122 = vector.broadcast %114 : vector<1x4x1xf32> to vector<2x4x16xf32>
    %123 = arith.subf %110, %122 : vector<2x4x16xf32>
    %cst_26 = arith.constant 9.99999974E-6 : f32
    %124 = vector.broadcast %cst_26 : f32 to vector<1x4x1xf32>
    %125 = arith.addf %121, %124 : vector<1x4x1xf32>
    %126 = math.rsqrt %125 : vector<1x4x1xf32>
    %127 = vector.broadcast %126 : vector<1x4x1xf32> to vector<2x4x16xf32>
    %128 = arith.mulf %123, %127 : vector<2x4x16xf32>
    %129 = tpu.reciprocal %110 {approx = true} : vector<2x4x16xf32> -> vector<2x4x16xf32>
    %130 = arith.mulf %110, %129 : vector<2x4x16xf32>
    %cst_27 = arith.constant 2.000000e+00 : f32
    %131 = vector.broadcast %cst_27 : f32 to vector<2x4x16xf32>
    %132 = arith.subf %131, %130 : vector<2x4x16xf32>
    %133 = arith.mulf %129, %132 : vector<2x4x16xf32>
    %134 = arith.mulf %128, %133 : vector<2x4x16xf32>
    %135 = arith.mulf %97, %134 : vector<2x4x16xf32>
    %136 = arith.mulf %98, %134 : vector<2x4x16xf32>
    %137 = arith.mulf %99, %134 : vector<2x4x16xf32>
    %138 = arith.mulf %135, %100 : vector<2x4x16xf32>
    %139 = arith.mulf %136, %101 : vector<2x4x16xf32>
    %140 = arith.addf %138, %139 : vector<2x4x16xf32>
    %141 = arith.mulf %137, %102 : vector<2x4x16xf32>
    %142 = arith.addf %140, %141 : vector<2x4x16xf32>
    %143 = arith.mulf %100, %100 : vector<2x4x16xf32>
    %144 = arith.mulf %101, %101 : vector<2x4x16xf32>
    %145 = arith.addf %143, %144 : vector<2x4x16xf32>
    %146 = arith.mulf %102, %102 : vector<2x4x16xf32>
    %147 = arith.addf %145, %146 : vector<2x4x16xf32>
    %cst_28 = arith.constant 0.000000e+00 : f32
    %148 = vector.broadcast %cst_28 : f32 to vector<2x4x16xf32>
    %149 = arith.cmpf oge, %142, %148 : vector<2x4x16xf32>
    %cst_29 = arith.constant 8.000000e-01 : f32
    %150 = vector.broadcast %cst_29 : f32 to vector<2x4x16xf32>
    %151 = arith.mulf %150, %142 : vector<2x4x16xf32>
    %cst_30 = arith.constant 9.99999997E-7 : f32
    %152 = vector.broadcast %cst_30 : f32 to vector<2x4x16xf32>
    %153 = arith.addf %147, %152 : vector<2x4x16xf32>
    %154 = tpu.reciprocal %153 {approx = true} : vector<2x4x16xf32> -> vector<2x4x16xf32>
    %155 = arith.mulf %153, %154 : vector<2x4x16xf32>
    %cst_31 = arith.constant 2.000000e+00 : f32
    %156 = vector.broadcast %cst_31 : f32 to vector<2x4x16xf32>
    %157 = arith.subf %156, %155 : vector<2x4x16xf32>
    %158 = arith.mulf %154, %157 : vector<2x4x16xf32>
    %159 = arith.mulf %151, %158 : vector<2x4x16xf32>
    %cst_32 = arith.constant 0.000000e+00 : f32
    %160 = vector.broadcast %cst_32 : f32 to vector<2x4x16xf32>
    %161 = arith.select %149, %160, %159 : vector<2x4x16xi1>, vector<2x4x16xf32>
    %162 = arith.mulf %161, %100 : vector<2x4x16xf32>
    %163 = arith.subf %135, %162 : vector<2x4x16xf32>
    %164 = arith.mulf %161, %101 : vector<2x4x16xf32>
    %165 = arith.subf %136, %164 : vector<2x4x16xf32>
    %166 = arith.mulf %161, %102 : vector<2x4x16xf32>
    %167 = arith.subf %137, %166 : vector<2x4x16xf32>
    %168 = tpu.concatenate %163, %165, %167 in 2 : vector<2x4x16xf32>, vector<2x4x16xf32>, vector<2x4x16xf32> -> vector<2x4x48xf32>
    %c0_33 = arith.constant 0 : index
    %c0_34 = arith.constant 0 : index
    %169 = vector.load %arg3[%c0_33, %c0_34] : memref<3x4xf32, #tpu.memory_space<vmem>>, vector<3x4xf32>
    %170 = vector.extract_strided_slice %168 {offsets = [0, 0, 0], sizes = [1, 4, 48], strides = [1, 1, 1]} : vector<2x4x48xf32> to vector<1x4x48xf32>
    %171 = vector.shape_cast %170 : vector<1x4x48xf32> to vector<4x48xf32>
    %cst_35 = arith.constant dense<0.000000e+00> : vector<3x48xf32>
    %172 = tpu.matmul %169, %171, %cst_35 {dimension_numbers = #tpu.dot_dimension_numbers<[1], [0], [0], [1], [0, 0, 1, 1], [], []>} : vector<3x4xf32>, vector<4x48xf32>, vector<3x48xf32> -> vector<3x48xf32>
    %173 = vector.extract_strided_slice %168 {offsets = [1, 0, 0], sizes = [1, 4, 48], strides = [1, 1, 1]} : vector<2x4x48xf32> to vector<1x4x48xf32>
    %174 = vector.shape_cast %173 : vector<1x4x48xf32> to vector<4x48xf32>
    %cst_36 = arith.constant dense<0.000000e+00> : vector<3x48xf32>
    %175 = tpu.matmul %169, %174, %cst_36 {dimension_numbers = #tpu.dot_dimension_numbers<[1], [0], [0], [1], [0, 0, 1, 1], [], []>} : vector<3x4xf32>, vector<4x48xf32>, vector<3x48xf32> -> vector<3x48xf32>
    %176 = vector.shape_cast %172 : vector<3x48xf32> to vector<1x3x48xf32>
    %177 = vector.shape_cast %175 : vector<3x48xf32> to vector<1x3x48xf32>
    %178 = tpu.concatenate %176, %177 in 0 : vector<1x3x48xf32>, vector<1x3x48xf32> -> vector<2x3x48xf32>
    %179 = vector.extract_strided_slice %178 {offsets = [0, 0, 0], sizes = [2, 1, 16], strides = [1, 1, 1]} : vector<2x3x48xf32> to vector<2x1x16xf32>
    %180 = vector.extract_strided_slice %178 {offsets = [0, 1, 0], sizes = [2, 1, 16], strides = [1, 1, 1]} : vector<2x3x48xf32> to vector<2x1x16xf32>
    %181 = vector.extract_strided_slice %178 {offsets = [0, 2, 0], sizes = [2, 1, 16], strides = [1, 1, 1]} : vector<2x3x48xf32> to vector<2x1x16xf32>
    %182 = tpu.concatenate %179, %180, %181 in 2 : vector<2x1x16xf32>, vector<2x1x16xf32>, vector<2x1x16xf32> -> vector<2x1x48xf32>
    %183 = vector.extract_strided_slice %178 {offsets = [0, 0, 16], sizes = [2, 1, 16], strides = [1, 1, 1]} : vector<2x3x48xf32> to vector<2x1x16xf32>
    %184 = vector.extract_strided_slice %178 {offsets = [0, 1, 16], sizes = [2, 1, 16], strides = [1, 1, 1]} : vector<2x3x48xf32> to vector<2x1x16xf32>
    %185 = vector.extract_strided_slice %178 {offsets = [0, 2, 16], sizes = [2, 1, 16], strides = [1, 1, 1]} : vector<2x3x48xf32> to vector<2x1x16xf32>
    %186 = tpu.concatenate %183, %184, %185 in 2 : vector<2x1x16xf32>, vector<2x1x16xf32>, vector<2x1x16xf32> -> vector<2x1x48xf32>
    %187 = vector.extract_strided_slice %178 {offsets = [0, 0, 32], sizes = [2, 1, 16], strides = [1, 1, 1]} : vector<2x3x48xf32> to vector<2x1x16xf32>
    %188 = vector.extract_strided_slice %178 {offsets = [0, 1, 32], sizes = [2, 1, 16], strides = [1, 1, 1]} : vector<2x3x48xf32> to vector<2x1x16xf32>
    %189 = vector.extract_strided_slice %178 {offsets = [0, 2, 32], sizes = [2, 1, 16], strides = [1, 1, 1]} : vector<2x3x48xf32> to vector<2x1x16xf32>
    %190 = tpu.concatenate %187, %188, %189 in 2 : vector<2x1x16xf32>, vector<2x1x16xf32>, vector<2x1x16xf32> -> vector<2x1x48xf32>
    %191 = tpu.concatenate %182, %186, %190 in 1 : vector<2x1x48xf32>, vector<2x1x48xf32>, vector<2x1x48xf32> -> vector<2x3x48xf32>
    %c0_37 = arith.constant 0 : index
    %c0_38 = arith.constant 0 : index
    %c0_39 = arith.constant 0 : index
    %192 = vector.load %arg5[%c0_37, %c0_38, %c0_39] : memref<2x3x48xf32, #tpu.memory_space<vmem>>, vector<2x3x48xf32>
    tpu.vector_store %arg5[%c0_37, %c0_38, %c0_39], %191 {strides = array<i32>} : memref<2x3x48xf32, #tpu.memory_space<vmem>>, vector<2x3x48xf32>,
    %193 = vector.extract_strided_slice %0 {offsets = [0, 0, 0], sizes = [2, 16, 16], strides = [1, 1, 1]} : vector<2x16x48xf32> to vector<2x16x16xf32>
    %194 = vector.extract_strided_slice %0 {offsets = [0, 0, 16], sizes = [2, 16, 16], strides = [1, 1, 1]} : vector<2x16x48xf32> to vector<2x16x16xf32>
    %195 = vector.extract_strided_slice %0 {offsets = [0, 0, 32], sizes = [2, 16, 16], strides = [1, 1, 1]} : vector<2x16x48xf32> to vector<2x16x16xf32>
    %196 = vector.extract_strided_slice %178 {offsets = [0, 0, 0], sizes = [2, 1, 16], strides = [1, 1, 1]} : vector<2x3x48xf32> to vector<2x1x16xf32>
    %197 = vector.broadcast %196 : vector<2x1x16xf32> to vector<2x16x16xf32>
    %198 = arith.mulf %193, %197 : vector<2x16x16xf32>
    %199 = vector.extract_strided_slice %178 {offsets = [0, 0, 16], sizes = [2, 1, 16], strides = [1, 1, 1]} : vector<2x3x48xf32> to vector<2x1x16xf32>
    %200 = vector.broadcast %199 : vector<2x1x16xf32> to vector<2x16x16xf32>
    %201 = arith.mulf %194, %200 : vector<2x16x16xf32>
    %202 = arith.addf %198, %201 : vector<2x16x16xf32>
    %203 = vector.extract_strided_slice %178 {offsets = [0, 0, 32], sizes = [2, 1, 16], strides = [1, 1, 1]} : vector<2x3x48xf32> to vector<2x1x16xf32>
    %204 = vector.broadcast %203 : vector<2x1x16xf32> to vector<2x16x16xf32>
    %205 = arith.mulf %195, %204 : vector<2x16x16xf32>
    %206 = arith.addf %202, %205 : vector<2x16x16xf32>
    %207 = vector.extract_strided_slice %178 {offsets = [0, 1, 0], sizes = [2, 1, 16], strides = [1, 1, 1]} : vector<2x3x48xf32> to vector<2x1x16xf32>
    %208 = vector.broadcast %207 : vector<2x1x16xf32> to vector<2x16x16xf32>
    %209 = arith.mulf %193, %208 : vector<2x16x16xf32>
    %210 = vector.extract_strided_slice %178 {offsets = [0, 1, 16], sizes = [2, 1, 16], strides = [1, 1, 1]} : vector<2x3x48xf32> to vector<2x1x16xf32>
    %211 = vector.broadcast %210 : vector<2x1x16xf32> to vector<2x16x16xf32>
    %212 = arith.mulf %194, %211 : vector<2x16x16xf32>
    %213 = arith.addf %209, %212 : vector<2x16x16xf32>
    %214 = vector.extract_strided_slice %178 {offsets = [0, 1, 32], sizes = [2, 1, 16], strides = [1, 1, 1]} : vector<2x3x48xf32> to vector<2x1x16xf32>
    %215 = vector.broadcast %214 : vector<2x1x16xf32> to vector<2x16x16xf32>
    %216 = arith.mulf %195, %215 : vector<2x16x16xf32>
    %217 = arith.addf %213, %216 : vector<2x16x16xf32>
    %218 = vector.extract_strided_slice %178 {offsets = [0, 2, 0], sizes = [2, 1, 16], strides = [1, 1, 1]} : vector<2x3x48xf32> to vector<2x1x16xf32>
    %219 = vector.broadcast %218 : vector<2x1x16xf32> to vector<2x16x16xf32>
    %220 = arith.mulf %193, %219 : vector<2x16x16xf32>
    %221 = vector.extract_strided_slice %178 {offsets = [0, 2, 16], sizes = [2, 1, 16], strides = [1, 1, 1]} : vector<2x3x48xf32> to vector<2x1x16xf32>
    %222 = vector.broadcast %221 : vector<2x1x16xf32> to vector<2x16x16xf32>
    %223 = arith.mulf %194, %222 : vector<2x16x16xf32>
    %224 = arith.addf %220, %223 : vector<2x16x16xf32>
    %225 = vector.extract_strided_slice %178 {offsets = [0, 2, 32], sizes = [2, 1, 16], strides = [1, 1, 1]} : vector<2x3x48xf32> to vector<2x1x16xf32>
    %226 = vector.broadcast %225 : vector<2x1x16xf32> to vector<2x16x16xf32>
    %227 = arith.mulf %195, %226 : vector<2x16x16xf32>
    %228 = arith.addf %224, %227 : vector<2x16x16xf32>
    %229 = tpu.concatenate %206, %217, %228 in 2 : vector<2x16x16xf32>, vector<2x16x16xf32>, vector<2x16x16xf32> -> vector<2x16x48xf32>
    %c0_40 = arith.constant 0 : index
    %c0_41 = arith.constant 0 : index
    %c0_42 = arith.constant 0 : index
    %230 = vector.load %arg4[%c0_40, %c0_41, %c0_42] : memref<2x16x48xf32, #tpu.memory_space<vmem>>, vector<2x16x48xf32>
    tpu.vector_store %arg4[%c0_40, %c0_41, %c0_42], %229 {strides = array<i32>} : memref<2x16x48xf32, #tpu.memory_space<vmem>>, vector<2x16x48xf32>,
    return
  }
}

</mosaic_0001>

<llo_original>
// kernel: vn_std_feature.1
$region0: #{vn_std_feature.1}
  #allocation0 [shape = 'u32[]', space=smem, size = 0x4, offset = 0x4, fixed_abs, tag = 'smem constant byte address 0x4 - core index']
  #allocation1 [shape = 'u32[144,128]{1,0:T(1,128)}', space=vmem, size = 0x12000, scoped, tag = 'internal scratch']
  %s0 = inlined_call_operand.vmem [shape: f32[2,16,48], index: 0, kind: input, shape index: {}]
  %s1 = inlined_call_operand.vmem [shape: f32[16,16], index: 1, kind: input, shape index: {}]
  %s2 = inlined_call_operand.vmem [shape: f32[8,8], index: 2, kind: input, shape index: {}]
  %s3 = inlined_call_operand.vmem [shape: f32[3,4], index: 3, kind: input, shape index: {}]
  %s4 = inlined_call_operand.vmem [shape: f32[2,16,48], index: 4, kind: output, shape index: {0}]
  %s5 = inlined_call_operand.vmem [shape: f32[2,3,48], index: 5, kind: output, shape index: {1}]
  %6 = xla_tuple %s4, %s5
  %s7 = sld [smem:[#allocation0]]
  $region34: #{vn_std_feature.1} parent=0
    _
  %s9 = ssub.s32 1, %s7
  %s10 = scalar_select 0, %s9, %s7
  // Predicated region
  $region2: #{vn_std_feature.1} parent=0 // pred_check
    _
  $region3: #{vn_std_feature.1} parent=0 // pred_check_branch
    %12 = sbr.rel (0) target = $region5
  $region4: #{vn_std_feature.1} parent=0 // pred_region
    _
  $region5: #{vn_std_feature.1} parent=0 // pred_fallthru
    _
  // Predicated region
  $region6: #{vn_std_feature.1} parent=0 // pred_check
    _
  $region7: #{vn_std_feature.1} parent=0 // pred_check_branch
    %14 = sbr.rel (0) target = $region9
  $region8: #{vn_std_feature.1} parent=0 // pred_region
    _
  $region9: #{vn_std_feature.1} parent=0 // pred_fallthru
    _
  // Predicated region
  $region10: #{vn_std_feature.1} parent=0 // pred_check
    _
  $region11: #{vn_std_feature.1} parent=0 // pred_check_branch
    %16 = sbr.rel (0) target = $region13
  $region12: #{vn_std_feature.1} parent=0 // pred_region
    _
  $region13: #{vn_std_feature.1} parent=0 // pred_fallthru
    _
  // Predicated region
  $region14: #{vn_std_feature.1} parent=0 // pred_check
    _
  $region15: #{vn_std_feature.1} parent=0 // pred_check_branch
    %18 = sbr.rel (0) target = $region17
  $region16: #{vn_std_feature.1} parent=0 // pred_region
    _
  $region17: #{vn_std_feature.1} parent=0 // pred_fallthru
    _
  %v19 = vld [vmem:[%s0] sm:$0xff]
  %v20 = vld [vmem:[%s0 + $0x8] sm:$0xff]
  %v21 = vld [vmem:[%s0 + $0x10] sm:$0xff]
  %v22 = vld [vmem:[%s0 + $0x18] sm:$0xff]
  %v23 = vld [vmem:[%s1] sm:$0xff]
  %v24 = vld [vmem:[%s1 + $0x8] sm:$0xff]
  %vm25 = vcmask 130048
  %v27 = vsel %vm25, %v23, 0
  %v30 = vsel %vm25, %v24, 0
  %32 = vmatprep.subr.mxu0 0.0
  %33 = vmatpush1.msra.mxu0 %v19
  %34 = vmatprep.subr.mxu0 0.0
  %35 = vmatpush1.msra.mxu0 %v20
  %36 = vmatprep.subr.mxu0 0.0
  %37 = vmatpush1.msra.mxu0 0.0
  %38 = vmatprep.subr.mxu0 0.0
  %39 = vmatpush1.msra.mxu0 0.0
  %40 = vmatprep.subr.mxu0 0.0
  %41 = vmatpush1.msra.mxu0 0.0
  %42 = vmatprep.subr.mxu0 0.0
  %43 = vmatpush1.msra.mxu0 0.0
  %44 = vmatprep.subr.mxu0 0.0
  %45 = vmatpush1.msra.mxu0 0.0
  %46 = vmatprep.subr.mxu0 0.0
  %47 = vmatpush1.msra.mxu0 0.0
  %48 = vmatprep.subr.mxu0 0.0
  %49 = vmatpush1.msra.mxu0 0.0
  %50 = vmatprep.subr.mxu0 0.0
  %51 = vmatpush1.msra.mxu0 0.0
  %52 = vmatprep.subr.mxu0 0.0
  %53 = vmatpush1.msra.mxu0 0.0
  %54 = vmatprep.subr.mxu0 0.0
  %55 = vmatpush1.msra.mxu0 0.0
  %56 = vmatprep.subr.mxu0 0.0
  %57 = vmatpush1.msra.mxu0 0.0
  %58 = vmatprep.subr.mxu0 0.0
  %59 = vmatpush1.msra.mxu0 0.0
  %60 = vmatprep.subr.mxu0 0.0
  %61 = vmatpush1.msra.mxu0 0.0
  %62 = vmatprep.subr.mxu0 0.0
  %63 = vmatpush1.msra.mxu0 0.0
  %64 = vmatprep.subr.mxu0 0.0
  %65 = vmatpush1.msra.mxu0 0.0
  %66 = vmatprep.subr.mxu0 0.0
  %67 = vmatpush1.msra.mxu0 0.0
  %68 = vmatprep.subr.mxu0 0.0
  %69 = vmatpush1.msra.mxu0 0.0
  %70 = vmatprep.subr.mxu0 0.0
  %71 = vmatpush1.msra.mxu0 0.0
  %72 = vmatprep.subr.mxu0 0.0
  %73 = vmatpush1.msra.mxu0 0.0
  %74 = vmatprep.subr.mxu0 0.0
  %75 = vmatpush1.msra.mxu0 0.0
  %76 = vmatprep.subr.mxu0 0.0
  %77 = vmatpush1.msra.mxu0 0.0
  %78 = vmatprep.subr.mxu0 0.0
  %79 = vmatpush1.msra.mxu0 0.0
  %80 = vmatprep.subr.mxu0 0.0
  %81 = vmatpush1.msra.mxu0 0.0
  %82 = vmatprep.subr.mxu0 0.0
  %83 = vmatpush1.msra.mxu0 0.0
  %84 = vmatprep.subr.mxu0 0.0
  %85 = vmatpush1.msra.mxu0 0.0
  %86 = vmatprep.subr.mxu0 0.0
  %87 = vmatpush1.msra.mxu0 0.0
  %88 = vmatprep.subr.mxu0 0.0
  %89 = vmatpush1.msra.mxu0 0.0
  %90 = vmatprep.subr.mxu0 0.0
  %91 = vmatpush1.msra.mxu0 0.0
  %92 = vmatprep.subr.mxu0 0.0
  %93 = vmatpush1.msra.mxu0 0.0
  %94 = vmatprep.subr.mxu0 0.0
  %95 = vmatpush1.msra.mxu0 0.0
  %96 = vmatprep.mubr.f32.mxu0 0.0
  %97 = vmatmul.mubr.f32.gmra.mrb[0].mxu0 %v27
  %v98 = vpop.f32.mrb[0].mxu0
  %v99 = vadd.f32 0.0, %v98
  %v100 = vpop.f32.mrb[0].mxu0
  %101 = vmatprep.mubr.f32.mxu0 0.0
  %102 = vmatmul.mubr.f32.gmra.mrb[0].mxu0 %v30
  %v103 = vpop.f32.mrb[0].mxu0
  %v104 = vadd.f32 0.0, %v103
  %v105 = vpop.f32.mrb[0].mxu0
  %106 = vdwg.mxu0
  %107 = vmatprep.subr.mxu0 0.0
  %108 = vmatpush1.msra.mxu0 %v21
  %109 = vmatprep.subr.mxu0 0.0
  %110 = vmatpush1.msra.mxu0 %v22
  %111 = vmatprep.subr.mxu0 0.0
  %112 = vmatpush1.msra.mxu0 0.0
  %113 = vmatprep.subr.mxu0 0.0
  %114 = vmatpush1.msra.mxu0 0.0
  %115 = vmatprep.subr.mxu0 0.0
  %116 = vmatpush1.msra.mxu0 0.0
  %117 = vmatprep.subr.mxu0 0.0
  %118 = vmatpush1.msra.mxu0 0.0
  %119 = vmatprep.subr.mxu0 0.0
  %120 = vmatpush1.msra.mxu0 0.0
  %121 = vmatprep.subr.mxu0 0.0
  %122 = vmatpush1.msra.mxu0 0.0
  %123 = vmatprep.subr.mxu0 0.0
  %124 = vmatpush1.msra.mxu0 0.0
  %125 = vmatprep.subr.mxu0 0.0
  %126 = vmatpush1.msra.mxu0 0.0
  %127 = vmatprep.subr.mxu0 0.0
  %128 = vmatpush1.msra.mxu0 0.0
  %129 = vmatprep.subr.mxu0 0.0
  %130 = vmatpush1.msra.mxu0 0.0
  %131 = vmatprep.subr.mxu0 0.0
  %132 = vmatpush1.msra.mxu0 0.0
  %133 = vmatprep.subr.mxu0 0.0
  %134 = vmatpush1.msra.mxu0 0.0
  %135 = vmatprep.subr.mxu0 0.0
  %136 = vmatpush1.msra.mxu0 0.0
  %137 = vmatprep.subr.mxu0 0.0
  %138 = vmatpush1.msra.mxu0 0.0
  %139 = vmatprep.subr.mxu0 0.0
  %140 = vmatpush1.msra.mxu0 0.0
  %141 = vmatprep.subr.mxu0 0.0
  %142 = vmatpush1.msra.mxu0 0.0
  %143 = vmatprep.subr.mxu0 0.0
  %144 = vmatpush1.msra.mxu0 0.0
  %145 = vmatprep.subr.mxu0 0.0
  %146 = vmatpush1.msra.mxu0 0.0
  %147 = vmatprep.subr.mxu0 0.0
  %148 = vmatpush1.msra.mxu0 0.0
  %149 = vmatprep.subr.mxu0 0.0
  %150 = vmatpush1.msra.mxu0 0.0
  %151 = vmatprep.subr.mxu0 0.0
  %152 = vmatpush1.msra.mxu0 0.0
  %153 = vmatprep.subr.mxu0 0.0
  %154 = vmatpush1.msra.mxu0 0.0
  %155 = vmatprep.subr.mxu0 0.0
  %156 = vmatpush1.msra.mxu0 0.0
  %157 = vmatprep.subr.mxu0 0.0
  %158 = vmatpush1.msra.mxu0 0.0
  %159 = vmatprep.subr.mxu0 0.0
  %160 = vmatpush1.msra.mxu0 0.0
  %161 = vmatprep.subr.mxu0 0.0
  %162 = vmatpush1.msra.mxu0 0.0
  %163 = vmatprep.subr.mxu0 0.0
  %164 = vmatpush1.msra.mxu0 0.0
  %165 = vmatprep.subr.mxu0 0.0
  %166 = vmatpush1.msra.mxu0 0.0
  %167 = vmatprep.subr.mxu0 0.0
  %168 = vmatpush1.msra.mxu0 0.0
  %169 = vmatprep.subr.mxu0 0.0
  %170 = vmatpush1.msra.mxu0 0.0
  %171 = vmatprep.mubr.f32.mxu0 0.0
  %172 = vmatmul.mubr.f32.gmra.mrb[0].mxu0 %v27
  %v173 = vpop.f32.mrb[0].mxu0
  %v174 = vadd.f32 0.0, %v173
  %v175 = vpop.f32.mrb[0].mxu0
  %176 = vmatprep.mubr.f32.mxu0 0.0
  %177 = vmatmul.mubr.f32.gmra.mrb[0].mxu0 %v30
  %v178 = vpop.f32.mrb[0].mxu0
  %v179 = vadd.f32 0.0, %v178
  %v180 = vpop.f32.mrb[0].mxu0
  %181 = vdwg.mxu0
  %v182 = vmul.f32 %v99, %v99
  %v183 = vmul.f32 %v174, %v174
  %186 = vrot.lane.b32.xlu0 %v182, 112
  %v187 = vpop.permute.xlu0 %186
  %188 = vrot.lane.b32.xlu0 %v183, 112
  %v189 = vpop.permute.xlu0 %188
  %v192 = vadd.f32 %v182, %v187
  %v193 = vadd.f32 %v183, %v189
  %194 = vrot.lane.b32.xlu0 %v182, 96
  %v195 = vpop.permute.xlu0 %194
  %196 = vrot.lane.b32.xlu0 %v183, 96
  %v197 = vpop.permute.xlu0 %196
  %v200 = vadd.f32 %v192, %v195
  %v201 = vadd.f32 %v193, %v197
  %v202 = vrsqrt.pop %v200
  %v203 = vmul.f32 %v200, %v202
  %vm204 = vcmp.eq.f32.partialorder %v200, inf
  %v205 = vsel %vm204, %v200, %v203
  %vm206 = vcmp.eq.f32.partialorder %v200, 0.0
  %v207 = vand.u32 %v200, 2147483648
  %v208 = vsel %vm206, %v207, %v205
  %v209 = vrsqrt.pop %v201
  %v210 = vmul.f32 %v201, %v209
  %vm211 = vcmp.eq.f32.partialorder %v201, inf
  %v212 = vsel %vm211, %v201, %v210
  %vm213 = vcmp.eq.f32.partialorder %v201, 0.0
  %v214 = vand.u32 %v201, 2147483648
  %v215 = vsel %vm213, %v214, %v212
  %v216 = vadd.f32 %v208, 1e-06
  %v217 = vadd.f32 %v215, 1e-06
  %v218 = vsel %vm25, %v216, 0.0
  %v219 = vsel %vm25, %v217, 0.0
  %v220 = vadd.f32 %v218, %v219
  %221 = vadd.xlane.f32.xlu0 %v220
  %v222 = vpop.xlane.xlu0 %221
  %v223 = vrcp.pop 32.0
  %v224 = vmul.f32 %v222, %v223
  %v225 = vsub.f32 %v216, %v224
  %v226 = vsub.f32 %v217, %v224
  %v227 = vmul.f32 %v225, %v225
  %v228 = vmul.f32 %v226, %v226
  %v229 = vsel %vm25, %v227, 0.0
  %v230 = vsel %vm25, %v228, 0.0
  %v231 = vadd.f32 %v229, %v230
  %232 = vadd.xlane.f32.xlu0 %v231
  %v233 = vpop.xlane.xlu0 %232
  %v234 = vmul.f32 %v233, %v223
  %v235 = vadd.f32 %v234, 1e-05
  %v236 = vrsqrt.pop %v235
  %v237 = vmul.f32 %v225, %v236
  %v238 = vmul.f32 %v226, %v236
  %v239 = vrcp.pop %v216
  %v240 = vrcp.pop %v217
  %v241 = vmul.f32 %v216, %v239
  %v242 = vmul.f32 %v217, %v240
  %v243 = vsub.f32 2.0, %v241
  %v244 = vsub.f32 2.0, %v242
  %v245 = vmul.f32 %v239, %v243
  %v246 = vmul.f32 %v240, %v244
  %v247 = vmul.f32 %v237, %v245
  %v248 = vmul.f32 %v238, %v246
  %v249 = vmul.f32 %v99, %v247
  %v250 = vmul.f32 %v174, %v248
  %253 = vrot.lane.b32.xlu0 %v247, 16
  %v254 = vpop.permute.xlu0 %253
  %255 = vrot.lane.b32.xlu0 %v248, 16
  %v256 = vpop.permute.xlu0 %255
  %v259 = vmul.f32 %v99, %v254
  %v260 = vmul.f32 %v174, %v256
  %261 = vrot.lane.b32.xlu0 %v247, 32
  %v262 = vpop.permute.xlu0 %261
  %263 = vrot.lane.b32.xlu0 %v248, 32
  %v264 = vpop.permute.xlu0 %263
  %v267 = vmul.f32 %v99, %v262
  %v268 = vmul.f32 %v174, %v264
  %v269 = vmul.f32 %v249, %v104
  %v270 = vmul.f32 %v250, %v179
  %v271 = vmul.f32 %v259, %v104
  %v272 = vmul.f32 %v260, %v179
  %275 = vrot.lane.b32.xlu0 %v271, 112
  %v276 = vpop.permute.xlu0 %275
  %277 = vrot.lane.b32.xlu0 %v272, 112
  %v278 = vpop.permute.xlu0 %277
  %v281 = vadd.f32 %v269, %v276
  %v282 = vadd.f32 %v270, %v278
  %v283 = vmul.f32 %v267, %v104
  %v284 = vmul.f32 %v268, %v179
  %287 = vrot.lane.b32.xlu0 %v283, 96
  %v288 = vpop.permute.xlu0 %287
  %289 = vrot.lane.b32.xlu0 %v284, 96
  %v290 = vpop.permute.xlu0 %289
  %v293 = vadd.f32 %v281, %v288
  %v294 = vadd.f32 %v282, %v290
  %v295 = vmul.f32 %v104, %v104
  %v296 = vmul.f32 %v179, %v179
  %299 = vrot.lane.b32.xlu0 %v295, 112
  %v300 = vpop.permute.xlu0 %299
  %301 = vrot.lane.b32.xlu0 %v296, 112
  %v302 = vpop.permute.xlu0 %301
  %v305 = vadd.f32 %v295, %v300
  %v306 = vadd.f32 %v296, %v302
  %307 = vrot.lane.b32.xlu0 %v295, 96
  %v308 = vpop.permute.xlu0 %307
  %309 = vrot.lane.b32.xlu0 %v296, 96
  %v310 = vpop.permute.xlu0 %309
  %v313 = vadd.f32 %v305, %v308
  %v314 = vadd.f32 %v306, %v310
  %vm315 = vcmp.ge.f32.partialorder %v293, 0.0
  %vm316 = vcmp.ge.f32.partialorder %v294, 0.0
  %v317 = vmul.f32 %v293, 0.8
  %v318 = vmul.f32 %v294, 0.8
  %v319 = vadd.f32 %v313, 1e-06
  %v320 = vadd.f32 %v314, 1e-06
  %v321 = vrcp.pop %v319
  %v322 = vrcp.pop %v320
  %v323 = vmul.f32 %v319, %v321
  %v324 = vmul.f32 %v320, %v322
  %v325 = vsub.f32 2.0, %v323
  %v326 = vsub.f32 2.0, %v324
  %v327 = vmul.f32 %v321, %v325
  %v328 = vmul.f32 %v322, %v326
  %v329 = vmul.f32 %v317, %v327
  %v330 = vmul.f32 %v318, %v328
  %v331 = vsel %vm315, 0.0, %v329
  %v332 = vsel %vm316, 0.0, %v330
  %v333 = vmul.f32 %v331, %v104
  %v334 = vmul.f32 %v332, %v179
  %v335 = vsub.f32 %v249, %v333
  %v336 = vsub.f32 %v250, %v334
  %339 = vrot.lane.b32.xlu0 %v104, 112
  %v340 = vpop.permute.xlu0 %339
  %341 = vrot.lane.b32.xlu0 %v179, 112
  %v342 = vpop.permute.xlu0 %341
  %v345 = vmul.f32 %v331, %v340
  %v346 = vmul.f32 %v332, %v342
  %349 = vrot.lane.b32.xlu0 %v345, 16
  %v350 = vpop.permute.xlu0 %349
  %351 = vrot.lane.b32.xlu0 %v346, 16
  %v352 = vpop.permute.xlu0 %351
  %v355 = vsub.f32 %v259, %v350
  %v356 = vsub.f32 %v260, %v352
  %357 = vrot.lane.b32.xlu0 %v104, 96
  %v358 = vpop.permute.xlu0 %357
  %359 = vrot.lane.b32.xlu0 %v179, 96
  %v360 = vpop.permute.xlu0 %359
  %v363 = vmul.f32 %v331, %v358
  %v364 = vmul.f32 %v332, %v360
  %367 = vrot.lane.b32.xlu0 %v363, 32
  %v368 = vpop.permute.xlu0 %367
  %369 = vrot.lane.b32.xlu0 %v364, 32
  %v370 = vpop.permute.xlu0 %369
  %v373 = vsub.f32 %v267, %v368
  %v374 = vsub.f32 %v268, %v370
  %v375 = vsel %vm25, %v335, %v355
  %v376 = vsel %vm25, %v336, %v356
  %vm377 = vcmask 261120
  %v378 = vsel %vm377, %v375, %v373
  %v379 = vsel %vm377, %v376, %v374
  %v380 = vld [vmem:[%s2] sm:$0xff]
  %vm381 = vcmask 64512
  %v383 = vsel %vm381, %v380, 0
  %385 = vmatprep.subr.mxu0 0.0
  %386 = vmatpush1.msra.mxu0 %v378
  %387 = vmatprep.subr.mxu0 0.0
  %388 = vmatpush1.msra.mxu0 0.0
  %389 = vmatprep.subr.mxu0 0.0
  %390 = vmatpush1.msra.mxu0 0.0
  %391 = vmatprep.subr.mxu0 0.0
  %392 = vmatpush1.msra.mxu0 0.0
  %393 = vmatprep.subr.mxu0 0.0
  %394 = vmatpush1.msra.mxu0 0.0
  %395 = vmatprep.subr.mxu0 0.0
  %396 = vmatpush1.msra.mxu0 0.0
  %397 = vmatprep.subr.mxu0 0.0
  %398 = vmatpush1.msra.mxu0 0.0
  %399 = vmatprep.subr.mxu0 0.0
  %400 = vmatpush1.msra.mxu0 0.0
  %401 = vmatprep.subr.mxu0 0.0
  %402 = vmatpush1.msra.mxu0 0.0
  %403 = vmatprep.subr.mxu0 0.0
  %404 = vmatpush1.msra.mxu0 0.0
  %405 = vmatprep.subr.mxu0 0.0
  %406 = vmatpush1.msra.mxu0 0.0
  %407 = vmatprep.subr.mxu0 0.0
  %408 = vmatpush1.msra.mxu0 0.0
  %409 = vmatprep.subr.mxu0 0.0
  %410 = vmatpush1.msra.mxu0 0.0
  %411 = vmatprep.subr.mxu0 0.0
  %412 = vmatpush1.msra.mxu0 0.0
  %413 = vmatprep.subr.mxu0 0.0
  %414 = vmatpush1.msra.mxu0 0.0
  %415 = vmatprep.subr.mxu0 0.0
  %416 = vmatpush1.msra.mxu0 0.0
  %417 = vmatprep.subr.mxu0 0.0
  %418 = vmatpush1.msra.mxu0 0.0
  %419 = vmatprep.subr.mxu0 0.0
  %420 = vmatpush1.msra.mxu0 0.0
  %421 = vmatprep.subr.mxu0 0.0
  %422 = vmatpush1.msra.mxu0 0.0
  %423 = vmatprep.subr.mxu0 0.0
  %424 = vmatpush1.msra.mxu0 0.0
  %425 = vmatprep.subr.mxu0 0.0
  %426 = vmatpush1.msra.mxu0 0.0
  %427 = vmatprep.subr.mxu0 0.0
  %428 = vmatpush1.msra.mxu0 0.0
  %429 = vmatprep.subr.mxu0 0.0
  %430 = vmatpush1.msra.mxu0 0.0
  %431 = vmatprep.subr.mxu0 0.0
  %432 = vmatpush1.msra.mxu0 0.0
  %433 = vmatprep.subr.mxu0 0.0
  %434 = vmatpush1.msra.mxu0 0.0
  %435 = vmatprep.subr.mxu0 0.0
  %436 = vmatpush1.msra.mxu0 0.0
  %437 = vmatprep.subr.mxu0 0.0
  %438 = vmatpush1.msra.mxu0 0.0
  %439 = vmatprep.subr.mxu0 0.0
  %440 = vmatpush1.msra.mxu0 0.0
  %441 = vmatprep.subr.mxu0 0.0
  %442 = vmatpush1.msra.mxu0 0.0
  %443 = vmatprep.subr.mxu0 0.0
  %444 = vmatpush1.msra.mxu0 0.0
  %445 = vmatprep.subr.mxu0 0.0
  %446 = vmatpush1.msra.mxu0 0.0
  %447 = vmatprep.subr.mxu0 0.0
  %448 = vmatpush1.msra.mxu0 0.0
  %449 = vmatprep.mubr.f32.mxu0 0.0
  %450 = vmatmul.mubr.f32.gmra.mrb[0].mxu0 %v383
  %v451 = vpop.f32.mrb[0].mxu0
  %v452 = vadd.f32 0.0, %v451
  %v453 = vpop.f32.mrb[0].mxu0
  %454 = vdwg.mxu0
  %455 = vmatprep.subr.mxu0 0.0
  %456 = vmatpush1.msra.mxu0 %v379
  %457 = vmatprep.subr.mxu0 0.0
  %458 = vmatpush1.msra.mxu0 0.0
  %459 = vmatprep.subr.mxu0 0.0
  %460 = vmatpush1.msra.mxu0 0.0
  %461 = vmatprep.subr.mxu0 0.0
  %462 = vmatpush1.msra.mxu0 0.0
  %463 = vmatprep.subr.mxu0 0.0
  %464 = vmatpush1.msra.mxu0 0.0
  %465 = vmatprep.subr.mxu0 0.0
  %466 = vmatpush1.msra.mxu0 0.0
  %467 = vmatprep.subr.mxu0 0.0
  %468 = vmatpush1.msra.mxu0 0.0
  %469 = vmatprep.subr.mxu0 0.0
  %470 = vmatpush1.msra.mxu0 0.0
  %471 = vmatprep.subr.mxu0 0.0
  %472 = vmatpush1.msra.mxu0 0.0
  %473 = vmatprep.subr.mxu0 0.0
  %474 = vmatpush1.msra.mxu0 0.0
  %475 = vmatprep.subr.mxu0 0.0
  %476 = vmatpush1.msra.mxu0 0.0
  %477 = vmatprep.subr.mxu0 0.0
  %478 = vmatpush1.msra.mxu0 0.0
  %479 = vmatprep.subr.mxu0 0.0
  %480 = vmatpush1.msra.mxu0 0.0
  %481 = vmatprep.subr.mxu0 0.0
  %482 = vmatpush1.msra.mxu0 0.0
  %483 = vmatprep.subr.mxu0 0.0
  %484 = vmatpush1.msra.mxu0 0.0
  %485 = vmatprep.subr.mxu0 0.0
  %486 = vmatpush1.msra.mxu0 0.0
  %487 = vmatprep.subr.mxu0 0.0
  %488 = vmatpush1.msra.mxu0 0.0
  %489 = vmatprep.subr.mxu0 0.0
  %490 = vmatpush1.msra.mxu0 0.0
  %491 = vmatprep.subr.mxu0 0.0
  %492 = vmatpush1.msra.mxu0 0.0
  %493 = vmatprep.subr.mxu0 0.0
  %494 = vmatpush1.msra.mxu0 0.0
  %495 = vmatprep.subr.mxu0 0.0
  %496 = vmatpush1.msra.mxu0 0.0
  %497 = vmatprep.subr.mxu0 0.0
  %498 = vmatpush1.msra.mxu0 0.0
  %499 = vmatprep.subr.mxu0 0.0
  %500 = vmatpush1.msra.mxu0 0.0
  %501 = vmatprep.subr.mxu0 0.0
  %502 = vmatpush1.msra.mxu0 0.0
  %503 = vmatprep.subr.mxu0 0.0
  %504 = vmatpush1.msra.mxu0 0.0
  %505 = vmatprep.subr.mxu0 0.0
  %506 = vmatpush1.msra.mxu0 0.0
  %507 = vmatprep.subr.mxu0 0.0
  %508 = vmatpush1.msra.mxu0 0.0
  %509 = vmatprep.subr.mxu0 0.0
  %510 = vmatpush1.msra.mxu0 0.0
  %511 = vmatprep.subr.mxu0 0.0
  %512 = vmatpush1.msra.mxu0 0.0
  %513 = vmatprep.subr.mxu0 0.0
  %514 = vmatpush1.msra.mxu0 0.0
  %515 = vmatprep.subr.mxu0 0.0
  %516 = vmatpush1.msra.mxu0 0.0
  %517 = vmatprep.subr.mxu0 0.0
  %518 = vmatpush1.msra.mxu0 0.0
  %519 = vmatprep.mubr.f32.mxu0 0.0
  %520 = vmatmul.mubr.f32.gmra.mrb[0].mxu0 %v383
  %v521 = vpop.f32.mrb[0].mxu0
  %v522 = vadd.f32 0.0, %v521
  %v523 = vpop.f32.mrb[0].mxu0
  %524 = vdwg.mxu0
  %v525 = vmul.f32 %v452, %v452
  %v526 = vmul.f32 %v522, %v522
  %529 = vrot.lane.b32.xlu0 %v525, 112
  %v530 = vpop.permute.xlu0 %529
  %531 = vrot.lane.b32.xlu0 %v526, 112
  %v532 = vpop.permute.xlu0 %531
  %v535 = vadd.f32 %v525, %v530
  %v536 = vadd.f32 %v526, %v532
  %537 = vrot.lane.b32.xlu0 %v525, 96
  %v538 = vpop.permute.xlu0 %537
  %539 = vrot.lane.b32.xlu0 %v526, 96
  %v540 = vpop.permute.xlu0 %539
  %v543 = vadd.f32 %v535, %v538
  %v544 = vadd.f32 %v536, %v540
  %v545 = vrsqrt.pop %v543
  %v546 = vmul.f32 %v543, %v545
  %vm547 = vcmp.eq.f32.partialorder %v543, inf
  %v548 = vsel %vm547, %v543, %v546
  %vm549 = vcmp.eq.f32.partialorder %v543, 0.0
  %v550 = vand.u32 %v543, 2147483648
  %v551 = vsel %vm549, %v550, %v548
  %v552 = vrsqrt.pop %v544
  %v553 = vmul.f32 %v544, %v552
  %vm554 = vcmp.eq.f32.partialorder %v544, inf
  %v555 = vsel %vm554, %v544, %v553
  %vm556 = vcmp.eq.f32.partialorder %v544, 0.0
  %v557 = vand.u32 %v544, 2147483648
  %v558 = vsel %vm556, %v557, %v555
  %v559 = vadd.f32 %v551, 1e-06
  %v560 = vadd.f32 %v558, 1e-06
  %vm561 = vcmask 125952
  %v562 = vsel %vm561, %v559, 0.0
  %v563 = vsel %vm561, %v560, 0.0
  %v564 = vadd.f32 %v562, %v563
  %565 = vadd.xlane.f32.xlu0 %v564
  %v566 = vpop.xlane.xlu0 %565
  %v567 = vmul.f32 %v566, %v223
  %v568 = vsub.f32 %v559, %v567
  %v569 = vsub.f32 %v560, %v567
  %v570 = vmul.f32 %v568, %v568
  %v571 = vmul.f32 %v569, %v569
  %v572 = vsel %vm561, %v570, 0.0
  %v573 = vsel %vm561, %v571, 0.0
  %v574 = vadd.f32 %v572, %v573
  %575 = vadd.xlane.f32.xlu0 %v574
  %v576 = vpop.xlane.xlu0 %575
  %v577 = vmul.f32 %v576, %v223
  %v578 = vadd.f32 %v577, 1e-05
  %v579 = vrsqrt.pop %v578
  %v580 = vmul.f32 %v568, %v579
  %v581 = vmul.f32 %v569, %v579
  %v582 = vrcp.pop %v559
  %v583 = vrcp.pop %v560
  %v584 = vmul.f32 %v559, %v582
  %v585 = vmul.f32 %v560, %v583
  %v586 = vsub.f32 2.0, %v584
  %v587 = vsub.f32 2.0, %v585
  %v588 = vmul.f32 %v582, %v586
  %v589 = vmul.f32 %v583, %v587
  %v590 = vmul.f32 %v580, %v588
  %v591 = vmul.f32 %v581, %v589
  %v592 = vmul.f32 %v452, %v590
  %v593 = vmul.f32 %v522, %v591
  %596 = vrot.lane.b32.xlu0 %v590, 16
  %v597 = vpop.permute.xlu0 %596
  %598 = vrot.lane.b32.xlu0 %v591, 16
  %v599 = vpop.permute.xlu0 %598
  %v602 = vmul.f32 %v452, %v597
  %v603 = vmul.f32 %v522, %v599
  %604 = vrot.lane.b32.xlu0 %v590, 32
  %v605 = vpop.permute.xlu0 %604
  %606 = vrot.lane.b32.xlu0 %v591, 32
  %v607 = vpop.permute.xlu0 %606
  %v610 = vmul.f32 %v452, %v605
  %v611 = vmul.f32 %v522, %v607
  %v614 = vrot.slane %v452, 4
  %v615 = vrot.slane %v522, 4
  %v618 = vmul.f32 %v592, %v614
  %v619 = vmul.f32 %v593, %v615
  %v620 = vmul.f32 %v602, %v614
  %v621 = vmul.f32 %v603, %v615
  %624 = vrot.lane.b32.xlu0 %v620, 112
  %v625 = vpop.permute.xlu0 %624
  %626 = vrot.lane.b32.xlu0 %v621, 112
  %v627 = vpop.permute.xlu0 %626
  %v630 = vadd.f32 %v618, %v625
  %v631 = vadd.f32 %v619, %v627
  %v632 = vmul.f32 %v610, %v614
  %v633 = vmul.f32 %v611, %v615
  %636 = vrot.lane.b32.xlu0 %v632, 96
  %v637 = vpop.permute.xlu0 %636
  %638 = vrot.lane.b32.xlu0 %v633, 96
  %v639 = vpop.permute.xlu0 %638
  %v642 = vadd.f32 %v630, %v637
  %v643 = vadd.f32 %v631, %v639
  %vm644 = vcmp.ge.f32.partialorder %v642, 0.0
  %vm645 = vcmp.ge.f32.partialorder %v643, 0.0
  %v646 = vmul.f32 %v642, 0.8
  %v647 = vmul.f32 %v643, 0.8
  %v648 = vadd.f32 %v543, 1e-06
  %v649 = vadd.f32 %v544, 1e-06
  %v650 = vrcp.pop %v648
  %v651 = vrcp.pop %v649
  %v652 = vmul.f32 %v648, %v650
  %v653 = vmul.f32 %v649, %v651
  %v654 = vsub.f32 2.0, %v652
  %v655 = vsub.f32 2.0, %v653
  %v656 = vmul.f32 %v650, %v654
  %v657 = vmul.f32 %v651, %v655
  %v660 = vrot.slane %v656, 4
  %v661 = vrot.slane %v657, 4
  %v664 = vmul.f32 %v646, %v660
  %v665 = vmul.f32 %v647, %v661
  %v666 = vsel %vm644, 0.0, %v664
  %v667 = vsel %vm645, 0.0, %v665
  %v668 = vmul.f32 %v666, %v614
  %v669 = vmul.f32 %v667, %v615
  %v670 = vsub.f32 %v592, %v668
  %v671 = vsub.f32 %v593, %v669
  %672 = vrot.lane.b32.xlu0 %v614, 112
  %v673 = vpop.permute.xlu0 %672
  %674 = vrot.lane.b32.xlu0 %v615, 112
  %v675 = vpop.permute.xlu0 %674
  %v678 = vmul.f32 %v666, %v673
  %v679 = vmul.f32 %v667, %v675
  %682 = vrot.lane.b32.xlu0 %v678, 16
  %v683 = vpop.permute.xlu0 %682
  %684 = vrot.lane.b32.xlu0 %v679, 16
  %v685 = vpop.permute.xlu0 %684
  %v688 = vsub.f32 %v602, %v683
  %v689 = vsub.f32 %v603, %v685
  %690 = vrot.lane.b32.xlu0 %v614, 96
  %v691 = vpop.permute.xlu0 %690
  %692 = vrot.lane.b32.xlu0 %v615, 96
  %v693 = vpop.permute.xlu0 %692
  %v696 = vmul.f32 %v666, %v691
  %v697 = vmul.f32 %v667, %v693
  %700 = vrot.lane.b32.xlu0 %v696, 32
  %v701 = vpop.permute.xlu0 %700
  %702 = vrot.lane.b32.xlu0 %v697, 32
  %v703 = vpop.permute.xlu0 %702
  %v706 = vsub.f32 %v610, %v701
  %v707 = vsub.f32 %v611, %v703
  %v708 = vsel %vm25, %v670, %v688
  %v709 = vsel %vm25, %v671, %v689
  %v710 = vsel %vm377, %v708, %v706
  %v711 = vsel %vm377, %v709, %v707
  %v712 = vld [vmem:[%s3] sm:$0x7]
  %vm713 = vcmask 31744
  %v715 = vsel %vm713, %v712, 0
  %vm717 = vcmask 1043456
  %v719 = vsel %vm717, %v710, 0
  %721 = vmatprep.subr.mxu0 0.0
  %722 = vmatpush1.msra.mxu0 %v719
  %723 = vmatprep.subr.mxu0 0.0
  %724 = vmatpush1.msra.mxu0 0.0
  %725 = vmatprep.subr.mxu0 0.0
  %726 = vmatpush1.msra.mxu0 0.0
  %727 = vmatprep.subr.mxu0 0.0
  %728 = vmatpush1.msra.mxu0 0.0
  %729 = vmatprep.subr.mxu0 0.0
  %730 = vmatpush1.msra.mxu0 0.0
  %731 = vmatprep.subr.mxu0 0.0
  %732 = vmatpush1.msra.mxu0 0.0
  %733 = vmatprep.subr.mxu0 0.0
  %734 = vmatpush1.msra.mxu0 0.0
  %735 = vmatprep.subr.mxu0 0.0
  %736 = vmatpush1.msra.mxu0 0.0
  %737 = vmatprep.subr.mxu0 0.0
  %738 = vmatpush1.msra.mxu0 0.0
  %739 = vmatprep.subr.mxu0 0.0
  %740 = vmatpush1.msra.mxu0 0.0
  %741 = vmatprep.subr.mxu0 0.0
  %742 = vmatpush1.msra.mxu0 0.0
  %743 = vmatprep.subr.mxu0 0.0
  %744 = vmatpush1.msra.mxu0 0.0
  %745 = vmatprep.subr.mxu0 0.0
  %746 = vmatpush1.msra.mxu0 0.0
  %747 = vmatprep.subr.mxu0 0.0
  %748 = vmatpush1.msra.mxu0 0.0
  %749 = vmatprep.subr.mxu0 0.0
  %750 = vmatpush1.msra.mxu0 0.0
  %751 = vmatprep.subr.mxu0 0.0
  %752 = vmatpush1.msra.mxu0 0.0
  %753 = vmatprep.subr.mxu0 0.0
  %754 = vmatpush1.msra.mxu0 0.0
  %755 = vmatprep.subr.mxu0 0.0
  %756 = vmatpush1.msra.mxu0 0.0
  %757 = vmatprep.subr.mxu0 0.0
  %758 = vmatpush1.msra.mxu0 0.0
  %759 = vmatprep.subr.mxu0 0.0
  %760 = vmatpush1.msra.mxu0 0.0
  %761 = vmatprep.subr.mxu0 0.0
  %762 = vmatpush1.msra.mxu0 0.0
  %763 = vmatprep.subr.mxu0 0.0
  %764 = vmatpush1.msra.mxu0 0.0
  %765 = vmatprep.subr.mxu0 0.0
  %766 = vmatpush1.msra.mxu0 0.0
  %767 = vmatprep.subr.mxu0 0.0
  %768 = vmatpush1.msra.mxu0 0.0
  %769 = vmatprep.subr.mxu0 0.0
  %770 = vmatpush1.msra.mxu0 0.0
  %771 = vmatprep.subr.mxu0 0.0
  %772 = vmatpush1.msra.mxu0 0.0
  %773 = vmatprep.subr.mxu0 0.0
  %774 = vmatpush1.msra.mxu0 0.0
  %775 = vmatprep.subr.mxu0 0.0
  %776 = vmatpush1.msra.mxu0 0.0
  %777 = vmatprep.subr.mxu0 0.0
  %778 = vmatpush1.msra.mxu0 0.0
  %779 = vmatprep.subr.mxu0 0.0
  %780 = vmatpush1.msra.mxu0 0.0
  %781 = vmatprep.subr.mxu0 0.0
  %782 = vmatpush1.msra.mxu0 0.0
  %783 = vmatprep.subr.mxu0 0.0
  %784 = vmatpush1.msra.mxu0 0.0
  %785 = vmatprep.mubr.f32.mxu0 0.0
  %786 = vmatmul.mubr.f32.gmra.mrb[0].mxu0 %v715
  %v787 = vpop.f32.mrb[0].mxu0
  %v788 = vadd.f32 0.0, %v787
  %v789 = vpop.f32.mrb[0].mxu0
  %790 = vdwg.mxu0
  %v792 = vsel %vm717, %v711, 0
  %794 = vmatprep.subr.mxu0 0.0
  %795 = vmatpush1.msra.mxu0 %v792
  %796 = vmatprep.subr.mxu0 0.0
  %797 = vmatpush1.msra.mxu0 0.0
  %798 = vmatprep.subr.mxu0 0.0
  %799 = vmatpush1.msra.mxu0 0.0
  %800 = vmatprep.subr.mxu0 0.0
  %801 = vmatpush1.msra.mxu0 0.0
  %802 = vmatprep.subr.mxu0 0.0
  %803 = vmatpush1.msra.mxu0 0.0
  %804 = vmatprep.subr.mxu0 0.0
  %805 = vmatpush1.msra.mxu0 0.0
  %806 = vmatprep.subr.mxu0 0.0
  %807 = vmatpush1.msra.mxu0 0.0
  %808 = vmatprep.subr.mxu0 0.0
  %809 = vmatpush1.msra.mxu0 0.0
  %810 = vmatprep.subr.mxu0 0.0
  %811 = vmatpush1.msra.mxu0 0.0
  %812 = vmatprep.subr.mxu0 0.0
  %813 = vmatpush1.msra.mxu0 0.0
  %814 = vmatprep.subr.mxu0 0.0
  %815 = vmatpush1.msra.mxu0 0.0
  %816 = vmatprep.subr.mxu0 0.0
  %817 = vmatpush1.msra.mxu0 0.0
  %818 = vmatprep.subr.mxu0 0.0
  %819 = vmatpush1.msra.mxu0 0.0
  %820 = vmatprep.subr.mxu0 0.0
  %821 = vmatpush1.msra.mxu0 0.0
  %822 = vmatprep.subr.mxu0 0.0
  %823 = vmatpush1.msra.mxu0 0.0
  %824 = vmatprep.subr.mxu0 0.0
  %825 = vmatpush1.msra.mxu0 0.0
  %826 = vmatprep.subr.mxu0 0.0
  %827 = vmatpush1.msra.mxu0 0.0
  %828 = vmatprep.subr.mxu0 0.0
  %829 = vmatpush1.msra.mxu0 0.0
  %830 = vmatprep.subr.mxu0 0.0
  %831 = vmatpush1.msra.mxu0 0.0
  %832 = vmatprep.subr.mxu0 0.0
  %833 = vmatpush1.msra.mxu0 0.0
  %834 = vmatprep.subr.mxu0 0.0
  %835 = vmatpush1.msra.mxu0 0.0
  %836 = vmatprep.subr.mxu0 0.0
  %837 = vmatpush1.msra.mxu0 0.0
  %838 = vmatprep.subr.mxu0 0.0
  %839 = vmatpush1.msra.mxu0 0.0
  %840 = vmatprep.subr.mxu0 0.0
  %841 = vmatpush1.msra.mxu0 0.0
  %842 = vmatprep.subr.mxu0 0.0
  %843 = vmatpush1.msra.mxu0 0.0
  %844 = vmatprep.subr.mxu0 0.0
  %845 = vmatpush1.msra.mxu0 0.0
  %846 = vmatprep.subr.mxu0 0.0
  %847 = vmatpush1.msra.mxu0 0.0
  %848 = vmatprep.subr.mxu0 0.0
  %849 = vmatpush1.msra.mxu0 0.0
  %850 = vmatprep.subr.mxu0 0.0
  %851 = vmatpush1.msra.mxu0 0.0
  %852 = vmatprep.subr.mxu0 0.0
  %853 = vmatpush1.msra.mxu0 0.0
  %854 = vmatprep.subr.mxu0 0.0
  %855 = vmatpush1.msra.mxu0 0.0
  %856 = vmatprep.subr.mxu0 0.0
  %857 = vmatpush1.msra.mxu0 0.0
  %858 = vmatprep.mubr.f32.mxu0 0.0
  %859 = vmatmul.mubr.f32.gmra.mrb[0].mxu0 %v715
  %v860 = vpop.f32.mrb[0].mxu0
  %v861 = vadd.f32 0.0, %v860
  %v862 = vpop.f32.mrb[0].mxu0
  %863 = vdwg.mxu0
  %v866 = vrot.slane %v788, 1
  %v867 = vrot.slane %v861, 1
  %868 = vrot.lane.b32.xlu0 %v866, 16
  %v869 = vpop.permute.xlu0 %868
  %870 = vrot.lane.b32.xlu0 %v867, 16
  %v871 = vpop.permute.xlu0 %870
  %v874 = vrot.slane %v788, 2
  %v875 = vrot.slane %v861, 2
  %876 = vrot.lane.b32.xlu0 %v874, 32
  %v877 = vpop.permute.xlu0 %876
  %878 = vrot.lane.b32.xlu0 %v875, 32
  %v879 = vpop.permute.xlu0 %878
  %v882 = vsel %vm25, %v788, %v869
  %v883 = vsel %vm25, %v861, %v871
  %v884 = vsel %vm377, %v882, %v877
  %v885 = vsel %vm377, %v883, %v879
  %886 = vrot.lane.b32.xlu0 %v788, 112
  %v887 = vpop.permute.xlu0 %886
  %888 = vrot.lane.b32.xlu0 %v861, 112
  %v889 = vpop.permute.xlu0 %888
  %894 = vrot.lane.b32.xlu0 %v874, 16
  %v895 = vpop.permute.xlu0 %894
  %896 = vrot.lane.b32.xlu0 %v875, 16
  %v897 = vpop.permute.xlu0 %896
  %v900 = vsel %vm25, %v887, %v866
  %v901 = vsel %vm25, %v889, %v867
  %v902 = vsel %vm377, %v900, %v895
  %v903 = vsel %vm377, %v901, %v897
  %904 = vrot.lane.b32.xlu0 %v788, 96
  %v905 = vpop.permute.xlu0 %904
  %906 = vrot.lane.b32.xlu0 %v861, 96
  %v907 = vpop.permute.xlu0 %906
  %910 = vrot.lane.b32.xlu0 %v866, 112
  %v911 = vpop.permute.xlu0 %910
  %912 = vrot.lane.b32.xlu0 %v867, 112
  %v913 = vpop.permute.xlu0 %912
  %v918 = vsel %vm25, %v905, %v911
  %v919 = vsel %vm25, %v907, %v913
  %v920 = vsel %vm377, %v918, %v874
  %v921 = vsel %vm377, %v919, %v875
  %v924 = vrot.slane %v902, 7
  %v925 = vrot.slane %v903, 7
  %v930 = vrot.slane %v920, 6
  %v931 = vrot.slane %v921, 6
  %vm934 = vcmask 1040384
  %v935 = vsel %vm934, %v884, %v924
  %v936 = vsel %vm934, %v885, %v925
  %vm937 = vcmask 1041408
  %v938 = vsel %vm937, %v935, %v930
  %v939 = vsel %vm937, %v936, %v931
  %vm940 = vcmask 387072
  %941 = vst.msk [vmem:[%s5] sm:$0x7] %vm940, %v938
  %942 = vst.msk [vmem:[%s5 + $0x4] sm:$0x7] %vm940, %v939
  %v943 = vlaneseq
  %v944 = vshrl.u32 %v943, 7
  %v945 = vsub.s32 0, %v944
  %v946 = vrot.slane %v788, %v945
  %v947 = vlaneseq
  %v948 = vshrl.u32 %v947, 7
  %v949 = vsub.s32 0, %v948
  %v950 = vrot.slane %v861, %v949
  %v951 = vmul.f32 %v19, %v946
  %v952 = vmul.f32 %v20, %v946
  %v953 = vmul.f32 %v21, %v950
  %v954 = vmul.f32 %v22, %v950
  %959 = vrot.lane.b32.xlu0 %v951, 112
  %v960 = vpop.permute.xlu0 %959
  %961 = vrot.lane.b32.xlu0 %v952, 112
  %v962 = vpop.permute.xlu0 %961
  %963 = vrot.lane.b32.xlu0 %v953, 112
  %v964 = vpop.permute.xlu0 %963
  %965 = vrot.lane.b32.xlu0 %v954, 112
  %v966 = vpop.permute.xlu0 %965
  %v971 = vadd.f32 %v951, %v960
  %v972 = vadd.f32 %v952, %v962
  %v973 = vadd.f32 %v953, %v964
  %v974 = vadd.f32 %v954, %v966
  %975 = vrot.lane.b32.xlu0 %v951, 96
  %v976 = vpop.permute.xlu0 %975
  %977 = vrot.lane.b32.xlu0 %v952, 96
  %v978 = vpop.permute.xlu0 %977
  %979 = vrot.lane.b32.xlu0 %v953, 96
  %v980 = vpop.permute.xlu0 %979
  %981 = vrot.lane.b32.xlu0 %v954, 96
  %v982 = vpop.permute.xlu0 %981
  %v987 = vadd.f32 %v971, %v976
  %v988 = vadd.f32 %v972, %v978
  %v989 = vadd.f32 %v973, %v980
  %v990 = vadd.f32 %v974, %v982
  %v991 = vlaneseq
  %v992 = vshrl.u32 %v991, 7
  %v993 = vsub.s32 1, %v992
  %v994 = vrot.slane %v788, %v993
  %v995 = vlaneseq
  %v996 = vshrl.u32 %v995, 7
  %v997 = vsub.s32 1, %v996
  %v998 = vrot.slane %v861, %v997
  %v999 = vmul.f32 %v19, %v994
  %v1000 = vmul.f32 %v20, %v994
  %v1001 = vmul.f32 %v21, %v998
  %v1002 = vmul.f32 %v22, %v998
  %1007 = vrot.lane.b32.xlu0 %v999, 112
  %v1008 = vpop.permute.xlu0 %1007
  %1009 = vrot.lane.b32.xlu0 %v1000, 112
  %v1010 = vpop.permute.xlu0 %1009
  %1011 = vrot.lane.b32.xlu0 %v1001, 112
  %v1012 = vpop.permute.xlu0 %1011
  %1013 = vrot.lane.b32.xlu0 %v1002, 112
  %v1014 = vpop.permute.xlu0 %1013
  %v1019 = vadd.f32 %v999, %v1008
  %v1020 = vadd.f32 %v1000, %v1010
  %v1021 = vadd.f32 %v1001, %v1012
  %v1022 = vadd.f32 %v1002, %v1014
  %1023 = vrot.lane.b32.xlu0 %v999, 96
  %v1024 = vpop.permute.xlu0 %1023
  %1025 = vrot.lane.b32.xlu0 %v1000, 96
  %v1026 = vpop.permute.xlu0 %1025
  %1027 = vrot.lane.b32.xlu0 %v1001, 96
  %v1028 = vpop.permute.xlu0 %1027
  %1029 = vrot.lane.b32.xlu0 %v1002, 96
  %v1030 = vpop.permute.xlu0 %1029
  %v1035 = vadd.f32 %v1019, %v1024
  %v1036 = vadd.f32 %v1020, %v1026
  %v1037 = vadd.f32 %v1021, %v1028
  %v1038 = vadd.f32 %v1022, %v1030
  %v1039 = vlaneseq
  %v1040 = vshrl.u32 %v1039, 7
  %v1041 = vsub.s32 2, %v1040
  %v1042 = vrot.slane %v788, %v1041
  %v1043 = vlaneseq
  %v1044 = vshrl.u32 %v1043, 7
  %v1045 = vsub.s32 2, %v1044
  %v1046 = vrot.slane %v861, %v1045
  %v1047 = vmul.f32 %v19, %v1042
  %v1048 = vmul.f32 %v20, %v1042
  %v1049 = vmul.f32 %v21, %v1046
  %v1050 = vmul.f32 %v22, %v1046
  %1055 = vrot.lane.b32.xlu0 %v1047, 112
  %v1056 = vpop.permute.xlu0 %1055
  %1057 = vrot.lane.b32.xlu0 %v1048, 112
  %v1058 = vpop.permute.xlu0 %1057
  %1059 = vrot.lane.b32.xlu0 %v1049, 112
  %v1060 = vpop.permute.xlu0 %1059
  %1061 = vrot.lane.b32.xlu0 %v1050, 112
  %v1062 = vpop.permute.xlu0 %1061
  %v1067 = vadd.f32 %v1047, %v1056
  %v1068 = vadd.f32 %v1048, %v1058
  %v1069 = vadd.f32 %v1049, %v1060
  %v1070 = vadd.f32 %v1050, %v1062
  %1071 = vrot.lane.b32.xlu0 %v1047, 96
  %v1072 = vpop.permute.xlu0 %1071
  %1073 = vrot.lane.b32.xlu0 %v1048, 96
  %v1074 = vpop.permute.xlu0 %1073
  %1075 = vrot.lane.b32.xlu0 %v1049, 96
  %v1076 = vpop.permute.xlu0 %1075
  %1077 = vrot.lane.b32.xlu0 %v1050, 96
  %v1078 = vpop.permute.xlu0 %1077
  %v1083 = vadd.f32 %v1067, %v1072
  %v1084 = vadd.f32 %v1068, %v1074
  %v1085 = vadd.f32 %v1069, %v1076
  %v1086 = vadd.f32 %v1070, %v1078
  %1091 = vrot.lane.b32.xlu0 %v1035, 16
  %v1092 = vpop.permute.xlu0 %1091
  %1093 = vrot.lane.b32.xlu0 %v1036, 16
  %v1094 = vpop.permute.xlu0 %1093
  %1095 = vrot.lane.b32.xlu0 %v1037, 16
  %v1096 = vpop.permute.xlu0 %1095
  %1097 = vrot.lane.b32.xlu0 %v1038, 16
  %v1098 = vpop.permute.xlu0 %1097
  %1107 = vrot.lane.b32.xlu0 %v1083, 32
  %v1108 = vpop.permute.xlu0 %1107
  %1109 = vrot.lane.b32.xlu0 %v1084, 32
  %v1110 = vpop.permute.xlu0 %1109
  %1111 = vrot.lane.b32.xlu0 %v1085, 32
  %v1112 = vpop.permute.xlu0 %1111
  %1113 = vrot.lane.b32.xlu0 %v1086, 32
  %v1114 = vpop.permute.xlu0 %1113
  %v1119 = vsel %vm25, %v987, %v1092
  %v1120 = vsel %vm25, %v988, %v1094
  %v1121 = vsel %vm25, %v989, %v1096
  %v1122 = vsel %vm25, %v990, %v1098
  %v1123 = vsel %vm377, %v1119, %v1108
  %v1124 = vsel %vm377, %v1120, %v1110
  %v1125 = vsel %vm377, %v1121, %v1112
  %v1126 = vsel %vm377, %v1122, %v1114
  %vm1127 = vcmask 392192
  %1128 = vst.msk [vmem:[%s4] sm:$0xff] %vm1127, %v1123
  %1129 = vst.msk [vmem:[%s4 + $0x8] sm:$0xff] %vm1127, %v1124
  %1130 = vst.msk [vmem:[%s4 + $0x10] sm:$0xff] %vm1127, %v1125
  %1131 = vst.msk [vmem:[%s4 + $0x18] sm:$0xff] %vm1127, %v1126
  // Predicated region
  $region18: #{vn_std_feature.1} parent=0 // pred_check
    _
  $region19: #{vn_std_feature.1} parent=0 // pred_check_branch
    %1133 = sbr.rel (0) target = $region21
  $region20: #{vn_std_feature.1} parent=0 // pred_region
    _
  $region21: #{vn_std_feature.1} parent=0 // pred_fallthru
    _
  // Predicated region
  $region22: #{vn_std_feature.1} parent=0 // pred_check
    _
  $region23: #{vn_std_feature.1} parent=0 // pred_check_branch
    %1135 = sbr.rel (0) target = $region25
  $region24: #{vn_std_feature.1} parent=0 // pred_region
    _
  $region25: #{vn_std_feature.1} parent=0 // pred_fallthru
    _
  // Predicated region
  $region26: #{vn_std_feature.1} parent=0 // pred_check
    _
  $region27: #{vn_std_feature.1} parent=0 // pred_check_branch
    %1137 = sbr.rel (0) target = $region29
  $region28: #{vn_std_feature.1} parent=0 // pred_region
    _
  $region29: #{vn_std_feature.1} parent=0 // pred_fallthru
    _
  // Predicated region
  $region30: #{vn_std_feature.1} parent=0 // pred_check
    _
  $region31: #{vn_std_feature.1} parent=0 // pred_check_branch
    %1139 = sbr.rel (0) target = $region33
  $region32: #{vn_std_feature.1} parent=0 // pred_region
    _
  $region33: #{vn_std_feature.1} parent=0 // pred_fallthru
    _

</llo_original>
